<compile_context>
chip_gen: v7x
topology: tpu7x:2x2x1
jax: 0.10.0
libtpu: 0.0.40
codegen_flags: <defaults>
</compile_context>

<pallas_src>
import numpy as np

import jax
import jax.numpy as jnp
from jax import lax
from jax.experimental import pallas as pl
from jax.experimental.pallas import tpu as pltpu


def _round_up(x, m):
    return (x + m - 1) // m * m


def _mlp_kernel(tiles_ref,                                    # SMEM (n_steps,) int32: touched vocab tiles
                s_ref, idx_ref,                               # resident: bag weights, token ids
                emb_ref,                                      # streamed (tv, H_pad) embedding tile
                w1_ref, b1_ref, w2_ref, b2_ref, w3_ref, b3_ref,
                out_ref,                                      # (B_pad, C_pad) f32
                acc_ref):                                     # (B_pad, H_pad) f32 scratch
    k = pl.program_id(0)
    TV = emb_ref.shape[0]
    N_pad = idx_ref.shape[0]

    @pl.when(k == 0)
    def _():
        acc_ref[...] = jnp.zeros_like(acc_ref)

    # --- EmbeddingBag(mode='mean') on this *touched* vocab tile, as two matmuls ---
    # T[j, v] = 1 iff token j's id equals the v-th vocab row of this tile (exact in f32).
    base = tiles_ref[k] * TV
    v_ids = base + lax.broadcasted_iota(jnp.int32, (N_pad, TV), 1)
    T = (idx_ref[...] == v_ids).astype(jnp.float32)                       # (N_pad, TV)

    # M[b, v] = (#occurrences of vocab row v in bag b) / len_b  -- exact counts in f32.
    M = jnp.dot(s_ref[...], T, preferred_element_type=jnp.float32)        # (B_pad, TV)

    # Stream the table in param dtype (bf16); accumulate the pooled mean in f32.
    acc_ref[...] += jnp.dot(M.astype(emb_ref.dtype), emb_ref[...],
                            preferred_element_type=jnp.float32)           # (B_pad, H_pad)

    # --- MLP head on the last grid step (dropout = identity in eval mode) ---
    @pl.when(k == pl.num_programs(0) - 1)
    def _():
        cdt = emb_ref.dtype
        h = jnp.maximum(acc_ref[...], 0.0)                                # relu (emb not pretrained)
        h = jnp.dot(h.astype(cdt), w1_ref[...],
                    preferred_element_type=jnp.float32) + b1_ref[...]
        h = jnp.maximum(h, 0.0)
        h = jnp.dot(h.astype(cdt), w2_ref[...],
                    preferred_element_type=jnp.float32) + b2_ref[...]
        h = jnp.maximum(h, 0.0)
        logits = jnp.dot(h.astype(cdt), w3_ref[...],
                         preferred_element_type=jnp.float32) + b3_ref[...]
        out_ref[...] = logits.astype(out_ref.dtype)
    # TODO(synk): CrossEntropyLoss branch (labels is not None) not implemented.
    # TODO(synk): tfidf per-sample weights / idf L2-normalization branches not implemented
    #             (module defaults are None).


def _vmem_bytes(shape, dtype):
    it = jnp.dtype(dtype).itemsize
    sub = max(8 * (4 // it), 8)
    r, c = shape
    return _round_up(r, sub) * _round_up(c, 128) * it


def mlp_forward(indices, offsets, emb, w1, b1, w2, b2, w3, b3, *,
                tv=256, param_dtype=jnp.bfloat16):
    N = int(indices.shape[0])
    B = int(offsets.shape[0])
    V, H = emb.shape
    C = w3.shape[1]

    # Hardware-tile padding (lane=128, sublane=8) so stores are lane-dense unmasked vst.
    B_pad = _round_up(B, 8)
    N_pad = _round_up(max(N, 1), 128)
    H_pad = _round_up(H, 128)
    C_pad = _round_up(C, 128)
    V_pad = _round_up(V, tv)
    n_vt = V_pad // tv

    # --- touched vocab tiles (data-dependent grid; wrapper runs eagerly) ---
    idx_np = np.asarray(jax.device_get(indices)).astype(np.int32)
    if idx_np.size > 0:
        tiles_np = np.unique(idx_np // tv)
        tiles_np = tiles_np[(tiles_np >= 0) & (tiles_np < n_vt)].astype(np.int32)
    else:
        tiles_np = np.zeros((0,), np.int32)
    if tiles_np.size == 0:
        tiles_np = np.zeros((1,), np.int32)   # one dummy step; padded ids (-1) match nothing
    tiles = jnp.asarray(tiles_np, dtype=jnp.int32)
    n_steps = int(tiles_np.shape[0])

    # --- EmbeddingBag bookkeeping (last bag runs to the end of `indices`) ---
    off_ext = jnp.concatenate([offsets.astype(jnp.int32), jnp.array([N], jnp.int32)])
    starts = off_ext[:B]
    ends = off_ext[1:B + 1]
    lens = jnp.maximum(ends - starts, 1)             # empty bag -> zeros
    inv_len = 1.0 / lens.astype(jnp.float32)         # mode='mean'

    # Bag-weight matrix S (grid-invariant -> built once here, stays resident in VMEM).
    j = jnp.arange(N_pad, dtype=jnp.int32)[None, :]
    in_bag = jnp.logical_and(j >= starts[:, None], j < ends[:, None])
    S = jnp.where(in_bag, inv_len[:, None], 0.0).astype(jnp.float32)      # (B, N_pad)
    S_p = jnp.pad(S, ((0, B_pad - B), (0, 0)))                            # padded bags: all-zero rows

    # Padded token ids get -1 so they match no vocab column.
    idx_p = jnp.pad(indices.astype(jnp.int32), (0, N_pad - N),
                    constant_values=-1).reshape(N_pad, 1)

    def pad2(x, r, c, dt):
        x = x.astype(jnp.float32)
        return jnp.pad(x, ((0, r - x.shape[0]), (0, c - x.shape[1]))).astype(dt)

    emb_p = pad2(emb, V_pad, H_pad, param_dtype)
    w1_p = pad2(w1, H_pad, H_pad, param_dtype)
    b1_p = pad2(b1, 1, H_pad, jnp.float32)
    w2_p = pad2(w2, H_pad, H_pad, param_dtype)
    b2_p = pad2(b2, 1, H_pad, jnp.float32)
    w3_p = pad2(w3, H_pad, C_pad, param_dtype)
    b3_p = pad2(b3, 1, C_pad, jnp.float32)

    def resident(shape):
        # full-array block, constant block index -> fetched once, stays resident in VMEM
        n = len(shape)
        return pl.BlockSpec(shape, lambda k, tiles_ref, _n=n: (0,) * _n)

    grid_spec = pltpu.PrefetchScalarGridSpec(
        num_scalar_prefetch=1,                         # touched-tile list in SMEM
        grid=(n_steps,),                               # only touched vocab tiles are visited
        in_specs=[
            resident((B_pad, N_pad)),                  # S: bag weights
            resident((N_pad, 1)),                      # token ids
            pl.BlockSpec((tv, H_pad),
                         lambda k, tiles_ref: (tiles_ref[k], 0)),   # gathered emb tile
            resident((H_pad, H_pad)), resident((1, H_pad)),         # layer 0
            resident((H_pad, H_pad)), resident((1, H_pad)),         # layer 1
            resident((H_pad, C_pad)), resident((1, C_pad)),         # classifier
        ],
        out_specs=pl.BlockSpec((B_pad, C_pad), lambda k, tiles_ref: (0, 0)),
        scratch_shapes=[pltpu.VMEM((B_pad, H_pad), jnp.float32)],
    )

    # Size scoped VMEM from the actual (double-buffered) buffers, with headroom.
    est = 2 * (_vmem_bytes((B_pad, N_pad), jnp.float32)
               + _vmem_bytes((N_pad, 1), jnp.int32)
               + _vmem_bytes((tv, H_pad), param_dtype)
               + 2 * _vmem_bytes((H_pad, H_pad), param_dtype)
               + _vmem_bytes((H_pad, C_pad), param_dtype)
               + 2 * _vmem_bytes((1, H_pad), jnp.float32)
               + _vmem_bytes((1, C_pad), jnp.float32)
               + _vmem_bytes((B_pad, C_pad), jnp.float32))
    est += _vmem_bytes((B_pad, H_pad), jnp.float32)
    vmem_limit = int(min(max(est + (4 << 20), 32 << 20), 128 << 20))

    out_pad = pl.pallas_call(
        _mlp_kernel,
        grid_spec=grid_spec,
        out_shape=jax.ShapeDtypeStruct((B_pad, C_pad), jnp.float32),
        compiler_params=pltpu.CompilerParams(
            dimension_semantics=("arbitrary",),        # reduction over touched vocab tiles
            vmem_limit_bytes=vmem_limit,
        ),
    )(tiles, S_p, idx_p, emb_p, w1_p, b1_p, w2_p, b2_p, w3_p, b3_p)

    return out_pad[:B, :C]


if __name__ == "__main__":
    key = jax.random.PRNGKey(0)
    V, H, C = 500, 32, 8          # vocab_size, hidden_size, num_classes
    B, N = 4, 16                  # number of bags, total token ids

    k = jax.random.split(key, 8)
    indices = jax.random.randint(k[0], (N,), 0, V, dtype=jnp.int32)
    offsets = jnp.array([0, 3, 7, 12], dtype=jnp.int32)   # bag start offsets (len B)
    emb = jax.random.normal(k[1], (V, H), jnp.float32) * 0.1
    w1 = jax.random.normal(k[2], (H, H), jnp.float32) * 0.1
    b1 = jax.random.normal(k[3], (1, H), jnp.float32) * 0.1
    w2 = jax.random.normal(k[4], (H, H), jnp.float32) * 0.1
    b2 = jax.random.normal(k[5], (1, H), jnp.float32) * 0.1
    w3 = jax.random.normal(k[6], (H, C), jnp.float32) * 0.1
    b3 = jax.random.normal(k[7], (1, C), jnp.float32) * 0.1

    out = mlp_forward(indices, offsets, emb, w1, b1, w2, b2, w3, b3,
                      tv=256, param_dtype=jnp.bfloat16)
    out = jax.block_until_ready(out)

    # Pure-JAX reference (same math as the PyTorch forward in eval mode), with the
    # weight matrices quantized to the same bf16 the kernel streams (biases stay f32).
    def q(x):
        return x.astype(jnp.bfloat16).astype(jnp.float32)

    emb_q, w1_q, w2_q, w3_q = q(emb), q(w1), q(w2), q(w3)
    off_ext = np.concatenate([np.asarray(offsets), np.array([N])])
    pooled = []
    for b in range(B):
        s, e = int(off_ext[b]), int(off_ext[b + 1])
        pooled.append(emb_q[indices[s:e]].mean(axis=0) if e > s
                      else jnp.zeros((H,), jnp.float32))
    h = jnp.maximum(jnp.stack(pooled), 0.0)
    h = jnp.maximum(h @ w1_q + b1[0], 0.0)
    h = jnp.maximum(h @ w2_q + b2[0], 0.0)
    ref = h @ w3_q + b3[0]

    assert jnp.allclose(out, ref, atol=1e-2, rtol=1e-2), (out, ref)
    print("KERNEL_OK")
</pallas_src>

<mosaic_0001>
module attributes {stable_mosaic.version = 11 : i64} {
  func.func @_mlp_kernel(%arg0: i32, %arg1: memref<2xi32, #tpu.memory_space<smem>>, %arg2: memref<8x128xf32, #tpu.memory_space<vmem>>, %arg3: memref<128x1xi32, #tpu.memory_space<vmem>>, %arg4: memref<256x128xbf16, #tpu.memory_space<vmem>>, %arg5: memref<128x128xbf16, #tpu.memory_space<vmem>>, %arg6: memref<1x128xf32, #tpu.memory_space<vmem>>, %arg7: memref<128x128xbf16, #tpu.memory_space<vmem>>, %arg8: memref<1x128xf32, #tpu.memory_space<vmem>>, %arg9: memref<128x128xbf16, #tpu.memory_space<vmem>>, %arg10: memref<1x128xf32, #tpu.memory_space<vmem>>, %arg11: memref<8x128xf32, #tpu.memory_space<vmem>>, %arg12: memref<8x128xf32, #tpu.memory_space<vmem>>) attributes {dimension_semantics = [#tpu.dimension_semantics<arbitrary>], iteration_bounds = array<i64: 2>, scalar_prefetch = 1 : i64, scratch_operands = 1 : i64, tpu.core_type = #tpu.core_type<tc>, window_params = [{pipeline_mode = #tpu.pipeline_mode<synchronous>, transform_indices = @transform_0, window_bounds = array<i64: 8, 128>}, {pipeline_mode = #tpu.pipeline_mode<synchronous>, transform_indices = @transform_1, window_bounds = array<i64: 128, 1>}, {transform_indices = @transform_2, window_bounds = array<i64: 256, 128>}, {pipeline_mode = #tpu.pipeline_mode<synchronous>, transform_indices = @transform_3, window_bounds = array<i64: 128, 128>}, {pipeline_mode = #tpu.pipeline_mode<synchronous>, transform_indices = @transform_4, window_bounds = array<i64: 1, 128>}, {pipeline_mode = #tpu.pipeline_mode<synchronous>, transform_indices = @transform_5, window_bounds = array<i64: 128, 128>}, {pipeline_mode = #tpu.pipeline_mode<synchronous>, transform_indices = @transform_6, window_bounds = array<i64: 1, 128>}, {pipeline_mode = #tpu.pipeline_mode<synchronous>, transform_indices = @transform_7, window_bounds = array<i64: 128, 128>}, {pipeline_mode = #tpu.pipeline_mode<synchronous>, transform_indices = @transform_8, window_bounds = array<i64: 1, 128>}, {pipeline_mode = #tpu.pipeline_mode<synchronous>, transform_indices = @transform_9, window_bounds = array<i64: 8, 128>}]} {
    %c0_i32 = arith.constant 0 : i32
    %0 = arith.cmpi eq, %arg0, %c0_i32 : i32
    %1 = arith.extui %0 : i1 to i32
    %c0_i32_0 = arith.constant 0 : i32
    %2 = arith.cmpi ne, %1, %c0_i32_0 : i32
    scf.if %2 {
      %cst_12 = arith.constant 0.000000e+00 : f32
      %25 = vector.broadcast %cst_12 : f32 to vector<8x128xf32>
      %c0_13 = arith.constant 0 : index
      %c0_14 = arith.constant 0 : index
      %26 = vector.load %arg12[%c0_13, %c0_14] : memref<8x128xf32, #tpu.memory_space<vmem>>, vector<8x128xf32>
      tpu.vector_store %arg12[%c0_13, %c0_14], %25 {strides = array<i32>} : memref<8x128xf32, #tpu.memory_space<vmem>>, vector<8x128xf32>,
    } else {
    }
    %3 = arith.index_cast %arg0 : i32 to index
    %4 = memref.load %arg1[%3] : memref<2xi32, #tpu.memory_space<smem>>
    %c256_i32 = arith.constant 256 : i32
    %5 = arith.muli %4, %c256_i32 : i32
    %6 = tpu.iota {dimensions = array<i32: 1>} : vector<128x256xi32>
    %7 = vector.broadcast %5 : i32 to vector<128x256xi32>
    %8 = arith.addi %7, %6 : vector<128x256xi32>
    %c0 = arith.constant 0 : index
    %c0_1 = arith.constant 0 : index
    %9 = vector.load %arg3[%c0, %c0_1] : memref<128x1xi32, #tpu.memory_space<vmem>>, vector<128x1xi32>
    %10 = vector.broadcast %9 : vector<128x1xi32> to vector<128x256xi32>
    %11 = arith.cmpi eq, %10, %8 : vector<128x256xi32>
    %12 = arith.extui %11 : vector<128x256xi1> to vector<128x256xi32>
    %13 = arith.sitofp %12 : vector<128x256xi32> to vector<128x256xf32>
    %c0_2 = arith.constant 0 : index
    %c0_3 = arith.constant 0 : index
    %14 = vector.load %arg2[%c0_2, %c0_3] : memref<8x128xf32, #tpu.memory_space<vmem>>, vector<8x128xf32>
    %cst = arith.constant dense<0.000000e+00> : vector<8x256xf32>
    %15 = tpu.matmul %14, %13, %cst {dimension_numbers = #tpu.dot_dimension_numbers<[1], [0], [0], [1], [0, 0, 1, 1], [], []>} : vector<8x128xf32>, vector<128x256xf32>, vector<8x256xf32> -> vector<8x256xf32>
    %c0_4 = arith.constant 0 : index
    %c0_5 = arith.constant 0 : index
    %16 = vector.load %arg12[%c0_4, %c0_5] : memref<8x128xf32, #tpu.memory_space<vmem>>, vector<8x128xf32>
    %17 = arith.truncf %15 : vector<8x256xf32> to vector<8x256xbf16>
    %c0_6 = arith.constant 0 : index
    %c0_7 = arith.constant 0 : index
    %18 = vector.load %arg4[%c0_6, %c0_7] : memref<256x128xbf16, #tpu.memory_space<vmem>>, vector<256x128xbf16>
    %cst_8 = arith.constant dense<0.000000e+00> : vector<8x128xf32>
    %19 = tpu.matmul %17, %18, %cst_8 {dimension_numbers = #tpu.dot_dimension_numbers<[1], [0], [0], [1], [0, 0, 1, 1], [], []>} : vector<8x256xbf16>, vector<256x128xbf16>, vector<8x128xf32> -> vector<8x128xf32>
    %20 = arith.addf %16, %19 : vector<8x128xf32>
    %c0_9 = arith.constant 0 : index
    %c0_10 = arith.constant 0 : index
    %21 = vector.load %arg12[%c0_9, %c0_10] : memref<8x128xf32, #tpu.memory_space<vmem>>, vector<8x128xf32>
    tpu.vector_store %arg12[%c0_9, %c0_10], %20 {strides = array<i32>} : memref<8x128xf32, #tpu.memory_space<vmem>>, vector<8x128xf32>,
    %c1_i32 = arith.constant 1 : i32
    %22 = arith.cmpi eq, %arg0, %c1_i32 : i32
    %23 = arith.extui %22 : i1 to i32
    %c0_i32_11 = arith.constant 0 : i32
    %24 = arith.cmpi ne, %23, %c0_i32_11 : i32
    scf.if %24 {
      %c0_12 = arith.constant 0 : index
      %c0_13 = arith.constant 0 : index
      %25 = vector.load %arg12[%c0_12, %c0_13] : memref<8x128xf32, #tpu.memory_space<vmem>>, vector<8x128xf32>
      %cst_14 = arith.constant 0.000000e+00 : f32
      %26 = vector.broadcast %cst_14 : f32 to vector<8x128xf32>
      %27 = arith.maximumf %25, %26 : vector<8x128xf32>
      %28 = arith.truncf %27 : vector<8x128xf32> to vector<8x128xbf16>
      %c0_15 = arith.constant 0 : index
      %c0_16 = arith.constant 0 : index
      %29 = vector.load %arg5[%c0_15, %c0_16] : memref<128x128xbf16, #tpu.memory_space<vmem>>, vector<128x128xbf16>
      %cst_17 = arith.constant dense<0.000000e+00> : vector<8x128xf32>
      %30 = tpu.matmul %28, %29, %cst_17 {dimension_numbers = #tpu.dot_dimension_numbers<[1], [0], [0], [1], [0, 0, 1, 1], [], []>} : vector<8x128xbf16>, vector<128x128xbf16>, vector<8x128xf32> -> vector<8x128xf32>
      %c0_18 = arith.constant 0 : index
      %c0_19 = arith.constant 0 : index
      %31 = vector.load %arg6[%c0_18, %c0_19] : memref<1x128xf32, #tpu.memory_space<vmem>>, vector<1x128xf32>
      %32 = vector.broadcast %31 : vector<1x128xf32> to vector<8x128xf32>
      %33 = arith.addf %30, %32 : vector<8x128xf32>
      %cst_20 = arith.constant 0.000000e+00 : f32
      %34 = vector.broadcast %cst_20 : f32 to vector<8x128xf32>
      %35 = arith.maximumf %33, %34 : vector<8x128xf32>
      %36 = arith.truncf %35 : vector<8x128xf32> to vector<8x128xbf16>
      %c0_21 = arith.constant 0 : index
      %c0_22 = arith.constant 0 : index
      %37 = vector.load %arg7[%c0_21, %c0_22] : memref<128x128xbf16, #tpu.memory_space<vmem>>, vector<128x128xbf16>
      %cst_23 = arith.constant dense<0.000000e+00> : vector<8x128xf32>
      %38 = tpu.matmul %36, %37, %cst_23 {dimension_numbers = #tpu.dot_dimension_numbers<[1], [0], [0], [1], [0, 0, 1, 1], [], []>} : vector<8x128xbf16>, vector<128x128xbf16>, vector<8x128xf32> -> vector<8x128xf32>
      %c0_24 = arith.constant 0 : index
      %c0_25 = arith.constant 0 : index
      %39 = vector.load %arg8[%c0_24, %c0_25] : memref<1x128xf32, #tpu.memory_space<vmem>>, vector<1x128xf32>
      %40 = vector.broadcast %39 : vector<1x128xf32> to vector<8x128xf32>
      %41 = arith.addf %38, %40 : vector<8x128xf32>
      %cst_26 = arith.constant 0.000000e+00 : f32
      %42 = vector.broadcast %cst_26 : f32 to vector<8x128xf32>
      %43 = arith.maximumf %41, %42 : vector<8x128xf32>
      %44 = arith.truncf %43 : vector<8x128xf32> to vector<8x128xbf16>
      %c0_27 = arith.constant 0 : index
      %c0_28 = arith.constant 0 : index
      %45 = vector.load %arg9[%c0_27, %c0_28] : memref<128x128xbf16, #tpu.memory_space<vmem>>, vector<128x128xbf16>
      %cst_29 = arith.constant dense<0.000000e+00> : vector<8x128xf32>
      %46 = tpu.matmul %44, %45, %cst_29 {dimension_numbers = #tpu.dot_dimension_numbers<[1], [0], [0], [1], [0, 0, 1, 1], [], []>} : vector<8x128xbf16>, vector<128x128xbf16>, vector<8x128xf32> -> vector<8x128xf32>
      %c0_30 = arith.constant 0 : index
      %c0_31 = arith.constant 0 : index
      %47 = vector.load %arg10[%c0_30, %c0_31] : memref<1x128xf32, #tpu.memory_space<vmem>>, vector<1x128xf32>
      %48 = vector.broadcast %47 : vector<1x128xf32> to vector<8x128xf32>
      %49 = arith.addf %46, %48 : vector<8x128xf32>
      %c0_32 = arith.constant 0 : index
      %c0_33 = arith.constant 0 : index
      %50 = vector.load %arg11[%c0_32, %c0_33] : memref<8x128xf32, #tpu.memory_space<vmem>>, vector<8x128xf32>
      tpu.vector_store %arg11[%c0_32, %c0_33], %49 {strides = array<i32>} : memref<8x128xf32, #tpu.memory_space<vmem>>, vector<8x128xf32>,
    } else {
    }
    return
  }
  func.func @transform_0(%arg0: i32, %arg1: memref<2xi32, #tpu.memory_space<smem>>) -> (i32, i32) {
    %c0_i32 = arith.constant 0 : i32
    %c0_i32_0 = arith.constant 0 : i32
    %c0_i32_1 = arith.constant 0 : i32
    return %c0_i32, %c0_i32_0 : i32, i32
  }
  func.func @transform_1(%arg0: i32, %arg1: memref<2xi32, #tpu.memory_space<smem>>) -> (i32, i32) {
    %c0_i32 = arith.constant 0 : i32
    %c0_i32_0 = arith.constant 0 : i32
    %c0_i32_1 = arith.constant 0 : i32
    return %c0_i32, %c0_i32_0 : i32, i32
  }
  func.func @transform_2(%arg0: i32, %arg1: memref<2xi32, #tpu.memory_space<smem>>) -> (i32, i32) {
    %0 = arith.index_cast %arg0 : i32 to index
    %1 = memref.load %arg1[%0] : memref<2xi32, #tpu.memory_space<smem>>
    %c0_i32 = arith.constant 0 : i32
    %c0_i32_0 = arith.constant 0 : i32
    return %1, %c0_i32 : i32, i32
  }
  func.func @transform_3(%arg0: i32, %arg1: memref<2xi32, #tpu.memory_space<smem>>) -> (i32, i32) {
    %c0_i32 = arith.constant 0 : i32
    %c0_i32_0 = arith.constant 0 : i32
    %c0_i32_1 = arith.constant 0 : i32
    return %c0_i32, %c0_i32_0 : i32, i32
  }
  func.func @transform_4(%arg0: i32, %arg1: memref<2xi32, #tpu.memory_space<smem>>) -> (i32, i32) {
    %c0_i32 = arith.constant 0 : i32
    %c0_i32_0 = arith.constant 0 : i32
    %c0_i32_1 = arith.constant 0 : i32
    return %c0_i32, %c0_i32_0 : i32, i32
  }
  func.func @transform_5(%arg0: i32, %arg1: memref<2xi32, #tpu.memory_space<smem>>) -> (i32, i32) {
    %c0_i32 = arith.constant 0 : i32
    %c0_i32_0 = arith.constant 0 : i32
    %c0_i32_1 = arith.constant 0 : i32
    return %c0_i32, %c0_i32_0 : i32, i32
  }
  func.func @transform_6(%arg0: i32, %arg1: memref<2xi32, #tpu.memory_space<smem>>) -> (i32, i32) {
    %c0_i32 = arith.constant 0 : i32
    %c0_i32_0 = arith.constant 0 : i32
    %c0_i32_1 = arith.constant 0 : i32
    return %c0_i32, %c0_i32_0 : i32, i32
  }
  func.func @transform_7(%arg0: i32, %arg1: memref<2xi32, #tpu.memory_space<smem>>) -> (i32, i32) {
    %c0_i32 = arith.constant 0 : i32
    %c0_i32_0 = arith.constant 0 : i32
    %c0_i32_1 = arith.constant 0 : i32
    return %c0_i32, %c0_i32_0 : i32, i32
  }
  func.func @transform_8(%arg0: i32, %arg1: memref<2xi32, #tpu.memory_space<smem>>) -> (i32, i32) {
    %c0_i32 = arith.constant 0 : i32
    %c0_i32_0 = arith.constant 0 : i32
    %c0_i32_1 = arith.constant 0 : i32
    return %c0_i32, %c0_i32_0 : i32, i32
  }
  func.func @transform_9(%arg0: i32, %arg1: memref<2xi32, #tpu.memory_space<smem>>) -> (i32, i32) {
    %c0_i32 = arith.constant 0 : i32
    %c0_i32_0 = arith.constant 0 : i32
    %c0_i32_1 = arith.constant 0 : i32
    return %c0_i32, %c0_i32_0 : i32, i32
  }
}

</mosaic_0001>

<llo_original>
// kernel: tpu_custom_call.1
$region0: #{tpu_custom_call.1}
  #allocation0 [shape = 'u32[]', space=smem, size = 0x4, offset = 0x4, fixed_abs, tag = 'smem constant byte address 0x4 - core index']
  #allocation1 [shape = 'u32[144,128]{1,0:T(1,128)}', space=vmem, size = 0x12000, scoped, tag = 'internal scratch']
  #allocation2 [shape = 'f32[8,128]{1,0:T(8,128)}', space=vmem, size = 0x1000, scoped, tag = 'scratch operand']
  #allocation3 [shape = 's32[1]{0}', space=sflag, size = 0x4, scoped, tag = 'scoped memory for tpu_custom_call.1']
  #allocation4 [shape = 'u8[512]{0}', space=smem, size = 0x200, scoped, tag = 'prefetched SMEM operand 0']
  %s0 = inlined_call_operand.vmem [shape: s32[2], index: 0, kind: input, shape index: {}]
  %s1 = inlined_call_operand.hbm [shape: f32[8,128], index: 1, kind: input, shape index: {}]
  %s2 = inlined_call_operand.vmem [shape: s32[128,1], index: 2, kind: input, shape index: {}]
  %s3 = inlined_call_operand.hbm [shape: bf16[512,128], index: 3, kind: input, shape index: {}]
  %s4 = inlined_call_operand.vmem [shape: bf16[128,128], index: 4, kind: input, shape index: {}]
  %s5 = inlined_call_operand.vmem [shape: f32[1,128], index: 5, kind: input, shape index: {}]
  %s6 = inlined_call_operand.vmem [shape: bf16[128,128], index: 6, kind: input, shape index: {}]
  %s7 = inlined_call_operand.vmem [shape: f32[1,128], index: 7, kind: input, shape index: {}]
  %s8 = inlined_call_operand.hbm [shape: bf16[128,128], index: 8, kind: input, shape index: {}]
  %s9 = inlined_call_operand.vmem [shape: f32[1,128], index: 9, kind: input, shape index: {}]
  %s10 = inlined_call_operand.hbm [shape: f32[8,128], index: 10, kind: output, shape index: {}]
  %s11 = sld [smem:[#allocation0]]
  $region89: #{tpu_custom_call.1} parent=0
    _
  %s13 = ssub.s32 1, %s11
  %s14 = scalar_select 0, %s13, %s11
  %s15 = sshll.u32 %s0, 4
  %s16 = int_to_ptr.vmem [resolvable:$true] %s15
  %18 = dma.vmem_to_smem %s16, 16, [#allocation4], [#allocation3]
  %19 = dma.done [#allocation3], 16
  %20 = sfence
  $region1: #{tpu_custom_call.1} parent=0
    #allocation5 [shape = 'u8[4096]{0}', space=vmem, size = 0x1000, scoped, tag = 'input window, operand 1, single buffered']
    #allocation6 [shape = 's32[2]{0}', space=sflag, size = 0x8, scoped, tag = 'scoped memory for tpu_custom_call.1']
    #allocation7 [shape = 's32[2]{0}', space=sflag, size = 0x8, scoped, tag = 'scoped memory for tpu_custom_call.1']
    #allocation8 [shape = 'u8[131072]{0}', space=vmem, size = 0x20000, scoped, tag = 'input window, operand 3']
    #allocation9 [shape = 's32[2]{0}', space=sflag, size = 0x8, scoped, tag = 'scoped memory for tpu_custom_call.1']
    #allocation10 [shape = 'u8[32768]{0}', space=vmem, size = 0x8000, scoped, tag = 'input window, operand 8, single buffered']
    #allocation11 [shape = 'u8[4096]{0}', space=vmem, size = 0x1000, scoped, tag = 'output window, operand 0, single buffered']
    %21 = vsyncpa [#allocation6], 0
    %22 = vsyncpa [#allocation9], 0
    %s23 = scalar_lea.sflag [#allocation9], 1
    %24 = vsyncpa %s23, 0
    %25 = vsyncpa [#allocation7], 0
    loop: start=0, step=1, limit=4
    $region2: #{tpu_custom_call.1} parent=1 // loop_pre_header
      _
    $region3: #{tpu_custom_call.1} parent=1 // loop_header
      %s27 = sphi 0, %s31
      %p28 = scmp.ge.s32.totalorder %s27, 4
      %s35 = sphi 0, %s35
      %s37 = sphi 0, %s35
      %s38 = sphi 0, %s37
      %s52 = sphi 0, %s38
      %s56 = sphi 0, %s56
      %s58 = sphi 0, %s56
      %s59 = sphi 0, %s58
      %s73 = sphi 0, %s59
      %s81 = sphi 0, %s83
      %s84 = sphi 0, %s81
      %s85 = sphi 0, %s84
      %s101 = sphi 0, %s85
      %s105 = sphi 0, %s105
      %s107 = sphi 0, %s105
      %s108 = sphi 0, %s107
      %s122 = sphi 0, %s108
      %s126 = sphi 0, %s126
      %s128 = sphi 0, %s126
      %s129 = sphi 0, %s128
      %s143 = sphi 0, %s129
      %s147 = sphi 0, %s147
      %s149 = sphi 0, %s147
      %s150 = sphi 0, %s149
      %s164 = sphi 0, %s150
      %s168 = sphi 0, %s168
      %s170 = sphi 0, %s168
      %s171 = sphi 0, %s170
      %s185 = sphi 0, %s171
      %s189 = sphi 0, %s189
      %s191 = sphi 0, %s189
      %s192 = sphi 0, %s191
      %s206 = sphi 0, %s192
      %s210 = sphi 0, %s210
      %s212 = sphi 0, %s210
      %s213 = sphi 0, %s212
      %s227 = sphi 0, %s213
      %s231 = sphi 0, %s231
      %s233 = sphi 0, %s231
      %s234 = sphi 0, %s233
      %s248 = sphi 0, %s234
    $region4: #{tpu_custom_call.1} parent=1 // loop_header_branch
      %30 = sbr.rel (%p28) target = $region8
    $region5: #{tpu_custom_call.1} parent=1 // loop_body
      %s32 = ssub.s32 %s27, 1
      %s33 = ssub.s32 %s27, 2
      %s34 = sadd.s32 %s27, 1
      %s36 = sadd.s32 %s35, 1
      %p39 = scmp.eq.s32.totalorder %s27, 1
      %p40 = scmp.ne.s32.totalorder %s35, %s37
      %p41 = scmp.eq.s32.totalorder %s27, 0
      %p42 = por %p40, %p41
      %p43 = scmp.ne.s32.totalorder %s35, %s37
      %p44 = scmp.eq.s32.totalorder %s32, 1
      %p45 = por %p43, %p44
      %p46 = scmp.ne.s32.totalorder %s37, %s38
      %p47 = scmp.eq.s32.totalorder %s32, 0
      %p48 = por %p46, %p47
      %p49 = scmp.ne.s32.totalorder %s37, %s38
      %p50 = scmp.eq.s32.totalorder %s33, 1
      %p51 = por %p49, %p50
      %p53 = scmp.ne.s32.totalorder %s38, %s52
      %p54 = scmp.eq.s32.totalorder %s33, 0
      %p55 = por %p53, %p54
      %s57 = sadd.s32 %s56, 1
      %p60 = scmp.eq.s32.totalorder %s27, 1
      %p61 = scmp.ne.s32.totalorder %s56, %s58
      %p62 = scmp.eq.s32.totalorder %s27, 0
      %p63 = por %p61, %p62
      %p64 = scmp.ne.s32.totalorder %s56, %s58
      %p65 = scmp.eq.s32.totalorder %s32, 1
      %p66 = por %p64, %p65
      %p67 = scmp.ne.s32.totalorder %s58, %s59
      %p68 = scmp.eq.s32.totalorder %s32, 0
      %p69 = por %p67, %p68
      %p70 = scmp.ne.s32.totalorder %s58, %s59
      %p71 = scmp.eq.s32.totalorder %s33, 1
      %p72 = por %p70, %p71
      %p74 = scmp.ne.s32.totalorder %s59, %s73
      %p75 = scmp.eq.s32.totalorder %s33, 0
      %p76 = por %p74, %p75
      %s77 = sld [smem:[#allocation4 + %s27]]
      %s78 = sld [smem:[#allocation4 + %s34]]
      %s79 = ssub.s32 %s77, %s78
      %p80 = scmp.eq.s32.totalorder %s79, 0
      %s82 = sadd.s32 %s81, 1
      %s83 = scalar_select %p80, %s81, %s82
      %p86 = pneg %p80
      %p87 = scmp.eq.s32.totalorder %s27, 1
      %p88 = por %p86, %p87
      %p89 = scmp.ne.s32.totalorder %s81, %s84
      %p90 = scmp.eq.s32.totalorder %s27, 0
      %p91 = por %p89, %p90
      %p92 = scmp.ne.s32.totalorder %s81, %s84
      %p93 = scmp.eq.s32.totalorder %s32, 1
      %p94 = por %p92, %p93
      %p95 = scmp.ne.s32.totalorder %s84, %s85
      %p96 = scmp.eq.s32.totalorder %s32, 0
      %p97 = por %p95, %p96
      %p98 = scmp.ne.s32.totalorder %s84, %s85
      %p99 = scmp.eq.s32.totalorder %s33, 1
      %p100 = por %p98, %p99
      %p102 = scmp.ne.s32.totalorder %s85, %s101
      %p103 = scmp.eq.s32.totalorder %s33, 0
      %p104 = por %p102, %p103
      %s106 = sadd.s32 %s105, 1
      %p109 = scmp.eq.s32.totalorder %s27, 1
      %p110 = scmp.ne.s32.totalorder %s105, %s107
      %p111 = scmp.eq.s32.totalorder %s27, 0
      %p112 = por %p110, %p111
      %p113 = scmp.ne.s32.totalorder %s105, %s107
      %p114 = scmp.eq.s32.totalorder %s32, 1
      %p115 = por %p113, %p114
      %p116 = scmp.ne.s32.totalorder %s107, %s108
      %p117 = scmp.eq.s32.totalorder %s32, 0
      %p118 = por %p116, %p117
      %p119 = scmp.ne.s32.totalorder %s107, %s108
      %p120 = scmp.eq.s32.totalorder %s33, 1
      %p121 = por %p119, %p120
      %p123 = scmp.ne.s32.totalorder %s108, %s122
      %p124 = scmp.eq.s32.totalorder %s33, 0
      %p125 = por %p123, %p124
      %s127 = sadd.s32 %s126, 1
      %p130 = scmp.eq.s32.totalorder %s27, 1
      %p131 = scmp.ne.s32.totalorder %s126, %s128
      %p132 = scmp.eq.s32.totalorder %s27, 0
      %p133 = por %p131, %p132
      %p134 = scmp.ne.s32.totalorder %s126, %s128
      %p135 = scmp.eq.s32.totalorder %s32, 1
      %p136 = por %p134, %p135
      %p137 = scmp.ne.s32.totalorder %s128, %s129
      %p138 = scmp.eq.s32.totalorder %s32, 0
      %p139 = por %p137, %p138
      %p140 = scmp.ne.s32.totalorder %s128, %s129
      %p141 = scmp.eq.s32.totalorder %s33, 1
      %p142 = por %p140, %p141
      %p144 = scmp.ne.s32.totalorder %s129, %s143
      %p145 = scmp.eq.s32.totalorder %s33, 0
      %p146 = por %p144, %p145
      %s148 = sadd.s32 %s147, 1
      %p151 = scmp.eq.s32.totalorder %s27, 1
      %p152 = scmp.ne.s32.totalorder %s147, %s149
      %p153 = scmp.eq.s32.totalorder %s27, 0
      %p154 = por %p152, %p153
      %p155 = scmp.ne.s32.totalorder %s147, %s149
      %p156 = scmp.eq.s32.totalorder %s32, 1
      %p157 = por %p155, %p156
      %p158 = scmp.ne.s32.totalorder %s149, %s150
      %p159 = scmp.eq.s32.totalorder %s32, 0
      %p160 = por %p158, %p159
      %p161 = scmp.ne.s32.totalorder %s149, %s150
      %p162 = scmp.eq.s32.totalorder %s33, 1
      %p163 = por %p161, %p162
      %p165 = scmp.ne.s32.totalorder %s150, %s164
      %p166 = scmp.eq.s32.totalorder %s33, 0
      %p167 = por %p165, %p166
      %s169 = sadd.s32 %s168, 1
      %p172 = scmp.eq.s32.totalorder %s27, 1
      %p173 = scmp.ne.s32.totalorder %s168, %s170
      %p174 = scmp.eq.s32.totalorder %s27, 0
      %p175 = por %p173, %p174
      %p176 = scmp.ne.s32.totalorder %s168, %s170
      %p177 = scmp.eq.s32.totalorder %s32, 1
      %p178 = por %p176, %p177
      %p179 = scmp.ne.s32.totalorder %s170, %s171
      %p180 = scmp.eq.s32.totalorder %s32, 0
      %p181 = por %p179, %p180
      %p182 = scmp.ne.s32.totalorder %s170, %s171
      %p183 = scmp.eq.s32.totalorder %s33, 1
      %p184 = por %p182, %p183
      %p186 = scmp.ne.s32.totalorder %s171, %s185
      %p187 = scmp.eq.s32.totalorder %s33, 0
      %p188 = por %p186, %p187
      %s190 = sadd.s32 %s189, 1
      %p193 = scmp.eq.s32.totalorder %s27, 1
      %p194 = scmp.ne.s32.totalorder %s189, %s191
      %p195 = scmp.eq.s32.totalorder %s27, 0
      %p196 = por %p194, %p195
      %p197 = scmp.ne.s32.totalorder %s189, %s191
      %p198 = scmp.eq.s32.totalorder %s32, 1
      %p199 = por %p197, %p198
      %p200 = scmp.ne.s32.totalorder %s191, %s192
      %p201 = scmp.eq.s32.totalorder %s32, 0
      %p202 = por %p200, %p201
      %p203 = scmp.ne.s32.totalorder %s191, %s192
      %p204 = scmp.eq.s32.totalorder %s33, 1
      %p205 = por %p203, %p204
      %p207 = scmp.ne.s32.totalorder %s192, %s206
      %p208 = scmp.eq.s32.totalorder %s33, 0
      %p209 = por %p207, %p208
      %s211 = sadd.s32 %s210, 1
      %p214 = scmp.eq.s32.totalorder %s27, 1
      %p215 = scmp.ne.s32.totalorder %s210, %s212
      %p216 = scmp.eq.s32.totalorder %s27, 0
      %p217 = por %p215, %p216
      %p218 = scmp.ne.s32.totalorder %s210, %s212
      %p219 = scmp.eq.s32.totalorder %s32, 1
      %p220 = por %p218, %p219
      %p221 = scmp.ne.s32.totalorder %s212, %s213
      %p222 = scmp.eq.s32.totalorder %s32, 0
      %p223 = por %p221, %p222
      %p224 = scmp.ne.s32.totalorder %s212, %s213
      %p225 = scmp.eq.s32.totalorder %s33, 1
      %p226 = por %p224, %p225
      %p228 = scmp.ne.s32.totalorder %s213, %s227
      %p229 = scmp.eq.s32.totalorder %s33, 0
      %p230 = por %p228, %p229
      %s232 = sadd.s32 %s231, 1
      %p235 = scmp.eq.s32.totalorder %s27, 1
      %p236 = scmp.ne.s32.totalorder %s231, %s233
      %p237 = scmp.eq.s32.totalorder %s27, 0
      %p238 = por %p236, %p237
      %p239 = scmp.ne.s32.totalorder %s231, %s233
      %p240 = scmp.eq.s32.totalorder %s32, 1
      %p241 = por %p239, %p240
      %p242 = scmp.ne.s32.totalorder %s233, %s234
      %p243 = scmp.eq.s32.totalorder %s32, 0
      %p244 = por %p242, %p243
      %p245 = scmp.ne.s32.totalorder %s233, %s234
      %p246 = scmp.eq.s32.totalorder %s33, 1
      %p247 = por %p245, %p246
      %p249 = scmp.ne.s32.totalorder %s234, %s248
      %p250 = scmp.eq.s32.totalorder %s33, 0
      %p251 = por %p249, %p250
      %p252 = scmp.le.s32.totalorder 1, %s27
      %p253 = scmp.lt.s32.totalorder %s27, 3
      %p254 = pnand %p252, %p253
      %p255 = pneg %p254
      // Predicated region
      $region9: #{tpu_custom_call.1} parent=5 // pred_check
        _
      $region10: #{tpu_custom_call.1} parent=5 // pred_check_branch
        %257 = sbr.rel (%p254) target = $region12
      $region11: #{tpu_custom_call.1} parent=5 // pred_region
        %s258 = ssub.s32 %s27, 1
        // Predicated region
        $region13: #{tpu_custom_call.1} parent=11 // pred_check
          %p259 = pneg %p48
        $region14: #{tpu_custom_call.1} parent=11 // pred_check_branch
          %261 = sbr.rel (%p259) target = $region16
        $region15: #{tpu_custom_call.1} parent=11 // pred_region
          %s263 = ssub.s32 128, 128
          %264 = vsyncadd [#allocation6], %s263
          %s266 = sshll.u32 [#allocation5], 4
          %s267 = int_to_ptr.vmem [resolvable:$true] %s266
          %269 = dma.hbm_to_vmem [thread:$0]  %s1, 128, %s267, [#allocation6]
        $region16: #{tpu_custom_call.1} parent=11 // pred_fallthru
          _
        // Predicated region
        $region17: #{tpu_custom_call.1} parent=11 // pred_check
          %p270 = pneg %p69
        $region18: #{tpu_custom_call.1} parent=11 // pred_check_branch
          %272 = sbr.rel (%p270) target = $region20
        $region19: #{tpu_custom_call.1} parent=11 // pred_region
          _
        $region20: #{tpu_custom_call.1} parent=11 // pred_fallthru
          _
        // Predicated region
        $region21: #{tpu_custom_call.1} parent=11 // pred_check
          %p273 = pneg %p118
        $region22: #{tpu_custom_call.1} parent=11 // pred_check_branch
          %275 = sbr.rel (%p273) target = $region24
        $region23: #{tpu_custom_call.1} parent=11 // pred_region
          _
        $region24: #{tpu_custom_call.1} parent=11 // pred_fallthru
          _
        // Predicated region
        $region25: #{tpu_custom_call.1} parent=11 // pred_check
          %p276 = pneg %p139
        $region26: #{tpu_custom_call.1} parent=11 // pred_check_branch
          %278 = sbr.rel (%p276) target = $region28
        $region27: #{tpu_custom_call.1} parent=11 // pred_region
          _
        $region28: #{tpu_custom_call.1} parent=11 // pred_fallthru
          _
        // Predicated region
        $region29: #{tpu_custom_call.1} parent=11 // pred_check
          %p279 = pneg %p160
        $region30: #{tpu_custom_call.1} parent=11 // pred_check_branch
          %281 = sbr.rel (%p279) target = $region32
        $region31: #{tpu_custom_call.1} parent=11 // pred_region
          _
        $region32: #{tpu_custom_call.1} parent=11 // pred_fallthru
          _
        // Predicated region
        $region33: #{tpu_custom_call.1} parent=11 // pred_check
          %p282 = pneg %p181
        $region34: #{tpu_custom_call.1} parent=11 // pred_check_branch
          %284 = sbr.rel (%p282) target = $region36
        $region35: #{tpu_custom_call.1} parent=11 // pred_region
          _
        $region36: #{tpu_custom_call.1} parent=11 // pred_fallthru
          _
        // Predicated region
        $region37: #{tpu_custom_call.1} parent=11 // pred_check
          %p285 = pneg %p202
        $region38: #{tpu_custom_call.1} parent=11 // pred_check_branch
          %287 = sbr.rel (%p285) target = $region40
        $region39: #{tpu_custom_call.1} parent=11 // pred_region
          %s289 = ssub.s32 1024, 1024
          %290 = vsyncadd [#allocation9], %s289
          %s291 = sshll.u32 [#allocation10], 4
          %s292 = int_to_ptr.vmem [resolvable:$true] %s291
          %297 = dma.hbm_to_vmem [thread:$0]  %s8, 1024, %s292, [#allocation9], 64, 64, 4
        $region40: #{tpu_custom_call.1} parent=11 // pred_fallthru
          _
        // Predicated region
        $region41: #{tpu_custom_call.1} parent=11 // pred_check
          %p298 = pneg %p223
        $region42: #{tpu_custom_call.1} parent=11 // pred_check_branch
          %300 = sbr.rel (%p298) target = $region44
        $region43: #{tpu_custom_call.1} parent=11 // pred_region
          _
        $region44: #{tpu_custom_call.1} parent=11 // pred_fallthru
          _
      $region12: #{tpu_custom_call.1} parent=5 // pred_fallthru
        _
      %p301 = scmp.lt.s32.totalorder %s27, 2
      // Predicated region
      $region45: #{tpu_custom_call.1} parent=5 // pred_check
        %p302 = pneg %p301
      $region46: #{tpu_custom_call.1} parent=5 // pred_check_branch
        %304 = sbr.rel (%p302) target = $region48
      $region47: #{tpu_custom_call.1} parent=5 // pred_region
        // Predicated region
        $region49: #{tpu_custom_call.1} parent=47 // pred_check
          %p305 = pneg %p91
        $region50: #{tpu_custom_call.1} parent=47 // pred_check_branch
          %307 = sbr.rel (%p305) target = $region52
        $region51: #{tpu_custom_call.1} parent=47 // pred_region
          %s308 = sand.u32 %s27, 1
          %s309 = scalar_lea.sflag [#allocation9], %s308
          %s310 = sand.u32 %s81, 1
          %s311 = smul.addr %s310, 128
          %s312 = scalar_lea.vmem [#allocation8], %s311
          %s313 = sld [smem:[#allocation4 + %s27]]
          %s314 = smul.u32 32, %s313
          %s316 = ssub.s32 2048, 2048
          %317 = vsyncadd %s309, %s316
          %s318 = smul.addr %s314, 64
          %s319 = scalar_lea.hbm %s3, %s318
          %s320 = sshll.u32 %s312, 4
          %s321 = int_to_ptr.vmem [resolvable:$true] %s320
          %326 = dma.hbm_to_vmem [thread:$0]  %s319, 2048, %s321, %s309, 64, 64, 4
        $region52: #{tpu_custom_call.1} parent=47 // pred_fallthru
          _
      $region48: #{tpu_custom_call.1} parent=5 // pred_fallthru
        _
      %p327 = scmp.le.s32.totalorder 1, %s27
      %p328 = scmp.lt.s32.totalorder %s27, 3
      %p329 = pnand %p327, %p328
      %p330 = pneg %p329
      // Predicated region
      $region53: #{tpu_custom_call.1} parent=5 // pred_check
        _
      $region54: #{tpu_custom_call.1} parent=5 // pred_check_branch
        %332 = sbr.rel (%p329) target = $region56
      $region55: #{tpu_custom_call.1} parent=5 // pred_region
        %s333 = ssub.s32 %s27, 1
        // Predicated region
        $region57: #{tpu_custom_call.1} parent=55 // pred_check
          %p334 = pneg %p48
        $region58: #{tpu_custom_call.1} parent=55 // pred_check_branch
          %336 = sbr.rel (%p334) target = $region60
        $region59: #{tpu_custom_call.1} parent=55 // pred_region
          %337 = dma.done [#allocation6], 128
        $region60: #{tpu_custom_call.1} parent=55 // pred_fallthru
          _
        %s338 = sand.u32 %s32, 1
        %s339 = scalar_lea.sflag [#allocation9], %s338
        %s340 = sand.u32 %s84, 1
        %s341 = smul.addr %s340, 128
        %s342 = scalar_lea.vmem [#allocation8], %s341
        // Predicated region
        $region61: #{tpu_custom_call.1} parent=55 // pred_check
          %p343 = pneg %p97
        $region62: #{tpu_custom_call.1} parent=55 // pred_check_branch
          %345 = sbr.rel (%p343) target = $region64
        $region63: #{tpu_custom_call.1} parent=55 // pred_region
          %346 = dma.done %s339, 2048
        $region64: #{tpu_custom_call.1} parent=55 // pred_fallthru
          _
        // Predicated region
        $region65: #{tpu_custom_call.1} parent=55 // pred_check
          %p347 = pneg %p202
        $region66: #{tpu_custom_call.1} parent=55 // pred_check_branch
          %349 = sbr.rel (%p347) target = $region68
        $region67: #{tpu_custom_call.1} parent=55 // pred_region
          %350 = dma.done [#allocation9], 1024
        $region68: #{tpu_custom_call.1} parent=55 // pred_fallthru
          _
        %p351 = pneg %p48
        %p352 = pneg %p45
        %p353 = pneg %p69
        %p354 = pneg %p66
        %s355 = sand.u32 %s32, 1
        %s356 = scalar_lea.sflag [#allocation9], %s355
        %s357 = sand.u32 %s84, 1
        %s358 = smul.addr %s357, 128
        %s359 = scalar_lea.vmem [#allocation8], %s358
        %p360 = pneg %p97
        %p361 = pneg %p94
        %p362 = pneg %p118
        %p363 = pneg %p115
        %p364 = pneg %p139
        %p365 = pneg %p136
        %p366 = pneg %p160
        %p367 = pneg %p157
        %p368 = pneg %p181
        %p369 = pneg %p178
        %p370 = pneg %p202
        %p371 = pneg %p199
        %p372 = pneg %p223
        %p373 = pneg %p220
        %p374 = pneg %p244
        %p375 = pneg %p241
        %s376 = sld [smem:[#allocation4 + %s32]]
        %s377 = smul.u32 32, %s376
        %p379 = scmp.eq.s32.totalorder %s32, 0
        // Predicated region
        $region69: #{tpu_custom_call.1} parent=55 // pred_check
          %p380 = pneg %p379
        $region70: #{tpu_custom_call.1} parent=55 // pred_check_branch
          %382 = sbr.rel (%p380) target = $region72
        $region71: #{tpu_custom_call.1} parent=55 // pred_region
          %383 = vst [vmem:[#allocation2] sm:$0xff] 0.0
        $region72: #{tpu_custom_call.1} parent=55 // pred_fallthru
          _
        %s384 = sld [smem:[#allocation4 + %s32]]
        %s385 = smul.u32 %s384, 256
        %v386 = vlaneseq
        %v387 = vand.u32 %v386, 127
        %v388 = vadd.s32 %v387, 128
        %v389 = vstv %s385
        %v390 = vadd.s32 %v389, %v387
        %v391 = vadd.s32 %v389, %v388
        %v392 = vld [vmem:[%s2] sm:$0xff]
        %v393 = vld [vmem:[%s2 + $0x8] sm:$0xff]
        %v394 = vld [vmem:[%s2 + $0x10] sm:$0xff]
        %v395 = vld [vmem:[%s2 + $0x18] sm:$0xff]
        %v396 = vld [vmem:[%s2 + $0x20] sm:$0xff]
        %v397 = vld [vmem:[%s2 + $0x28] sm:$0xff]
        %v398 = vld [vmem:[%s2 + $0x30] sm:$0xff]
        %v399 = vld [vmem:[%s2 + $0x38] sm:$0xff]
        %v400 = vld [vmem:[%s2 + $0x40] sm:$0xff]
        %v401 = vld [vmem:[%s2 + $0x48] sm:$0xff]
        %v402 = vld [vmem:[%s2 + $0x50] sm:$0xff]
        %v403 = vld [vmem:[%s2 + $0x58] sm:$0xff]
        %v404 = vld [vmem:[%s2 + $0x60] sm:$0xff]
        %v405 = vld [vmem:[%s2 + $0x68] sm:$0xff]
        %v406 = vld [vmem:[%s2 + $0x70] sm:$0xff]
        %v407 = vld [vmem:[%s2 + $0x78] sm:$0xff]
        %408 = vset.pattern.permute.xlu0 0
        %409 = vperm.xlu0 %408, %v392
        %v410 = vpop.permute.xlu0 %409
        %411 = vset.pattern.permute.xlu0 0
        %412 = vperm.xlu0 %411, %v393
        %v413 = vpop.permute.xlu0 %412
        %414 = vset.pattern.permute.xlu0 0
        %415 = vperm.xlu0 %414, %v394
        %v416 = vpop.permute.xlu0 %415
        %417 = vset.pattern.permute.xlu0 0
        %418 = vperm.xlu0 %417, %v395
        %v419 = vpop.permute.xlu0 %418
        %420 = vset.pattern.permute.xlu0 0
        %421 = vperm.xlu0 %420, %v396
        %v422 = vpop.permute.xlu0 %421
        %423 = vset.pattern.permute.xlu0 0
        %424 = vperm.xlu0 %423, %v397
        %v425 = vpop.permute.xlu0 %424
        %426 = vset.pattern.permute.xlu0 0
        %427 = vperm.xlu0 %426, %v398
        %v428 = vpop.permute.xlu0 %427
        %429 = vset.pattern.permute.xlu0 0
        %430 = vperm.xlu0 %429, %v399
        %v431 = vpop.permute.xlu0 %430
        %432 = vset.pattern.permute.xlu0 0
        %433 = vperm.xlu0 %432, %v400
        %v434 = vpop.permute.xlu0 %433
        %435 = vset.pattern.permute.xlu0 0
        %436 = vperm.xlu0 %435, %v401
        %v437 = vpop.permute.xlu0 %436
        %438 = vset.pattern.permute.xlu0 0
        %439 = vperm.xlu0 %438, %v402
        %v440 = vpop.permute.xlu0 %439
        %441 = vset.pattern.permute.xlu0 0
        %442 = vperm.xlu0 %441, %v403
        %v443 = vpop.permute.xlu0 %442
        %444 = vset.pattern.permute.xlu0 0
        %445 = vperm.xlu0 %444, %v404
        %v446 = vpop.permute.xlu0 %445
        %447 = vset.pattern.permute.xlu0 0
        %448 = vperm.xlu0 %447, %v405
        %v449 = vpop.permute.xlu0 %448
        %450 = vset.pattern.permute.xlu0 0
        %451 = vperm.xlu0 %450, %v406
        %v452 = vpop.permute.xlu0 %451
        %453 = vset.pattern.permute.xlu0 0
        %454 = vperm.xlu0 %453, %v407
        %v455 = vpop.permute.xlu0 %454
        %vm456 = vcmp.eq.s32.totalorder %v410, %v390
        %vm457 = vcmp.eq.s32.totalorder %v410, %v391
        %vm458 = vcmp.eq.s32.totalorder %v413, %v390
        %vm459 = vcmp.eq.s32.totalorder %v413, %v391
        %vm460 = vcmp.eq.s32.totalorder %v416, %v390
        %vm461 = vcmp.eq.s32.totalorder %v416, %v391
        %vm462 = vcmp.eq.s32.totalorder %v419, %v390
        %vm463 = vcmp.eq.s32.totalorder %v419, %v391
        %vm464 = vcmp.eq.s32.totalorder %v422, %v390
        %vm465 = vcmp.eq.s32.totalorder %v422, %v391
        %vm466 = vcmp.eq.s32.totalorder %v425, %v390
        %vm467 = vcmp.eq.s32.totalorder %v425, %v391
        %vm468 = vcmp.eq.s32.totalorder %v428, %v390
        %vm469 = vcmp.eq.s32.totalorder %v428, %v391
        %vm470 = vcmp.eq.s32.totalorder %v431, %v390
        %vm471 = vcmp.eq.s32.totalorder %v431, %v391
        %vm472 = vcmp.eq.s32.totalorder %v434, %v390
        %vm473 = vcmp.eq.s32.totalorder %v434, %v391
        %vm474 = vcmp.eq.s32.totalorder %v437, %v390
        %vm475 = vcmp.eq.s32.totalorder %v437, %v391
        %vm476 = vcmp.eq.s32.totalorder %v440, %v390
        %vm477 = vcmp.eq.s32.totalorder %v440, %v391
        %vm478 = vcmp.eq.s32.totalorder %v443, %v390
        %vm479 = vcmp.eq.s32.totalorder %v443, %v391
        %vm480 = vcmp.eq.s32.totalorder %v446, %v390
        %vm481 = vcmp.eq.s32.totalorder %v446, %v391
        %vm482 = vcmp.eq.s32.totalorder %v449, %v390
        %vm483 = vcmp.eq.s32.totalorder %v449, %v391
        %vm484 = vcmp.eq.s32.totalorder %v452, %v390
        %vm485 = vcmp.eq.s32.totalorder %v452, %v391
        %vm486 = vcmp.eq.s32.totalorder %v455, %v390
        %vm487 = vcmp.eq.s32.totalorder %v455, %v391
        %v488 = vsel %vm456, 1, 0
        %v489 = vsel %vm457, 1, 0
        %v490 = vsel %vm458, 1, 0
        %v491 = vsel %vm459, 1, 0
        %v492 = vsel %vm460, 1, 0
        %v493 = vsel %vm461, 1, 0
        %v494 = vsel %vm462, 1, 0
        %v495 = vsel %vm463, 1, 0
        %v496 = vsel %vm464, 1, 0
        %v497 = vsel %vm465, 1, 0
        %v498 = vsel %vm466, 1, 0
        %v499 = vsel %vm467, 1, 0
        %v500 = vsel %vm468, 1, 0
        %v501 = vsel %vm469, 1, 0
        %v502 = vsel %vm470, 1, 0
        %v503 = vsel %vm471, 1, 0
        %v504 = vsel %vm472, 1, 0
        %v505 = vsel %vm473, 1, 0
        %v506 = vsel %vm474, 1, 0
        %v507 = vsel %vm475, 1, 0
        %v508 = vsel %vm476, 1, 0
        %v509 = vsel %vm477, 1, 0
        %v510 = vsel %vm478, 1, 0
        %v511 = vsel %vm479, 1, 0
        %v512 = vsel %vm480, 1, 0
        %v513 = vsel %vm481, 1, 0
        %v514 = vsel %vm482, 1, 0
        %v515 = vsel %vm483, 1, 0
        %v516 = vsel %vm484, 1, 0
        %v517 = vsel %vm485, 1, 0
        %v518 = vsel %vm486, 1, 0
        %v519 = vsel %vm487, 1, 0
        %v520 = vcvt.s32.f32 %v488
        %v521 = vcvt.s32.f32 %v489
        %v522 = vcvt.s32.f32 %v490
        %v523 = vcvt.s32.f32 %v491
        %v524 = vcvt.s32.f32 %v492
        %v525 = vcvt.s32.f32 %v493
        %v526 = vcvt.s32.f32 %v494
        %v527 = vcvt.s32.f32 %v495
        %v528 = vcvt.s32.f32 %v496
        %v529 = vcvt.s32.f32 %v497
        %v530 = vcvt.s32.f32 %v498
        %v531 = vcvt.s32.f32 %v499
        %v532 = vcvt.s32.f32 %v500
        %v533 = vcvt.s32.f32 %v501
        %v534 = vcvt.s32.f32 %v502
        %v535 = vcvt.s32.f32 %v503
        %v536 = vcvt.s32.f32 %v504
        %v537 = vcvt.s32.f32 %v505
        %v538 = vcvt.s32.f32 %v506
        %v539 = vcvt.s32.f32 %v507
        %v540 = vcvt.s32.f32 %v508
        %v541 = vcvt.s32.f32 %v509
        %v542 = vcvt.s32.f32 %v510
        %v543 = vcvt.s32.f32 %v511
        %v544 = vcvt.s32.f32 %v512
        %v545 = vcvt.s32.f32 %v513
        %v546 = vcvt.s32.f32 %v514
        %v547 = vcvt.s32.f32 %v515
        %v548 = vcvt.s32.f32 %v516
        %v549 = vcvt.s32.f32 %v517
        %v550 = vcvt.s32.f32 %v518
        %v551 = vcvt.s32.f32 %v519
        %v552 = vld [vmem:[#allocation5] sm:$0xff]
        %553 = vmatprep.subr.mxu0 %v521
        %554 = vmatpush1.msra.mxu0 %v520
        %555 = vmatprep.subr.mxu0 %v523
        %556 = vmatpush1.msra.mxu0 %v522
        %557 = vmatprep.subr.mxu0 %v525
        %558 = vmatpush1.msra.mxu0 %v524
        %559 = vmatprep.subr.mxu0 %v527
        %560 = vmatpush1.msra.mxu0 %v526
        %561 = vmatprep.subr.mxu0 %v529
        %562 = vmatpush1.msra.mxu0 %v528
        %563 = vmatprep.subr.mxu0 %v531
        %564 = vmatpush1.msra.mxu0 %v530
        %565 = vmatprep.subr.mxu0 %v533
        %566 = vmatpush1.msra.mxu0 %v532
        %567 = vmatprep.subr.mxu0 %v535
        %568 = vmatpush1.msra.mxu0 %v534
        %569 = vmatprep.subr.mxu0 %v537
        %570 = vmatpush1.msra.mxu0 %v536
        %571 = vmatprep.subr.mxu0 %v539
        %572 = vmatpush1.msra.mxu0 %v538
        %573 = vmatprep.subr.mxu0 %v541
        %574 = vmatpush1.msra.mxu0 %v540
        %575 = vmatprep.subr.mxu0 %v543
        %576 = vmatpush1.msra.mxu0 %v542
        %577 = vmatprep.subr.mxu0 %v545
        %578 = vmatpush1.msra.mxu0 %v544
        %579 = vmatprep.subr.mxu0 %v547
        %580 = vmatpush1.msra.mxu0 %v546
        %581 = vmatprep.subr.mxu0 %v549
        %582 = vmatpush1.msra.mxu0 %v548
        %583 = vmatprep.subr.mxu0 %v551
        %584 = vmatpush1.msra.mxu0 %v550
        %585 = vmatprep.subr.mxu0 0.0
        %586 = vmatpush1.msra.mxu0 0.0
        %587 = vmatprep.subr.mxu0 0.0
        %588 = vmatpush1.msra.mxu0 0.0
        %589 = vmatprep.subr.mxu0 0.0
        %590 = vmatpush1.msra.mxu0 0.0
        %591 = vmatprep.subr.mxu0 0.0
        %592 = vmatpush1.msra.mxu0 0.0
        %593 = vmatprep.subr.mxu0 0.0
        %594 = vmatpush1.msra.mxu0 0.0
        %595 = vmatprep.subr.mxu0 0.0
        %596 = vmatpush1.msra.mxu0 0.0
        %597 = vmatprep.subr.mxu0 0.0
        %598 = vmatpush1.msra.mxu0 0.0
        %599 = vmatprep.subr.mxu0 0.0
        %600 = vmatpush1.msra.mxu0 0.0
        %601 = vmatprep.subr.mxu0 0.0
        %602 = vmatpush1.msra.mxu0 0.0
        %603 = vmatprep.subr.mxu0 0.0
        %604 = vmatpush1.msra.mxu0 0.0
        %605 = vmatprep.subr.mxu0 0.0
        %606 = vmatpush1.msra.mxu0 0.0
        %607 = vmatprep.subr.mxu0 0.0
        %608 = vmatpush1.msra.mxu0 0.0
        %609 = vmatprep.subr.mxu0 0.0
        %610 = vmatpush1.msra.mxu0 0.0
        %611 = vmatprep.subr.mxu0 0.0
        %612 = vmatpush1.msra.mxu0 0.0
        %613 = vmatprep.subr.mxu0 0.0
        %614 = vmatpush1.msra.mxu0 0.0
        %615 = vmatprep.subr.mxu0 0.0
        %616 = vmatpush1.msra.mxu0 0.0
        %617 = vmatprep.mubr.f32.mxu0 0.0
        %618 = vmatmul.mubr.f32.gmra.mrb[0].mxu0 %v552
        %v619 = vpop.f32.mrb[0].mxu0
        %v620 = vadd.f32 0.0, %v619
        %v621 = vpop.f32.mrb[0].mxu0
        %v622 = vadd.f32 0.0, %v621
        %623 = vdwg.mxu0
        %v624 = vld [vmem:[#allocation2] sm:$0xff]
        %v625 = vpack.c.bf16 %v620, %v620
        %v626 = vpack.c.bf16 %v622, %v622
        %v627 = vld [vmem:[%s342] sm:$0xf]
        %v628 = vld [vmem:[%s342 + $0x4] sm:$0xf]
        %v629 = vld [vmem:[%s342 + $0x8] sm:$0xf]
        %v630 = vld [vmem:[%s342 + $0xc] sm:$0xf]
        %v631 = vld [vmem:[%s342 + $0x10] sm:$0xf]
        %v632 = vld [vmem:[%s342 + $0x14] sm:$0xf]
        %v633 = vld [vmem:[%s342 + $0x18] sm:$0xf]
        %v634 = vld [vmem:[%s342 + $0x1c] sm:$0xf]
        %v635 = vld [vmem:[%s342 + $0x20] sm:$0xf]
        %v636 = vld [vmem:[%s342 + $0x24] sm:$0xf]
        %v637 = vld [vmem:[%s342 + $0x28] sm:$0xf]
        %v638 = vld [vmem:[%s342 + $0x2c] sm:$0xf]
        %v639 = vld [vmem:[%s342 + $0x30] sm:$0xf]
        %v640 = vld [vmem:[%s342 + $0x34] sm:$0xf]
        %v641 = vld [vmem:[%s342 + $0x38] sm:$0xf]
        %v642 = vld [vmem:[%s342 + $0x3c] sm:$0xf]
        %v643 = vld [vmem:[%s342 + $0x40] sm:$0xf]
        %v644 = vld [vmem:[%s342 + $0x44] sm:$0xf]
        %v645 = vld [vmem:[%s342 + $0x48] sm:$0xf]
        %v646 = vld [vmem:[%s342 + $0x4c] sm:$0xf]
        %v647 = vld [vmem:[%s342 + $0x50] sm:$0xf]
        %v648 = vld [vmem:[%s342 + $0x54] sm:$0xf]
        %v649 = vld [vmem:[%s342 + $0x58] sm:$0xf]
        %v650 = vld [vmem:[%s342 + $0x5c] sm:$0xf]
        %v651 = vld [vmem:[%s342 + $0x60] sm:$0xf]
        %v652 = vld [vmem:[%s342 + $0x64] sm:$0xf]
        %v653 = vld [vmem:[%s342 + $0x68] sm:$0xf]
        %v654 = vld [vmem:[%s342 + $0x6c] sm:$0xf]
        %v655 = vld [vmem:[%s342 + $0x70] sm:$0xf]
        %v656 = vld [vmem:[%s342 + $0x74] sm:$0xf]
        %v657 = vld [vmem:[%s342 + $0x78] sm:$0xf]
        %v658 = vld [vmem:[%s342 + $0x7c] sm:$0xf]
        %v691 = vunpack.c.l.b16 %v627
        %v692 = vunpack.c.l.b16 %v628
        %v693 = vunpack.c.l.b16 %v629
        %v694 = vunpack.c.l.b16 %v630
        %v695 = vunpack.c.l.b16 %v631
        %v696 = vunpack.c.l.b16 %v632
        %v697 = vunpack.c.l.b16 %v633
        %v698 = vunpack.c.l.b16 %v634
        %v699 = vunpack.c.l.b16 %v635
        %v700 = vunpack.c.l.b16 %v636
        %v701 = vunpack.c.l.b16 %v637
        %v702 = vunpack.c.l.b16 %v638
        %v703 = vunpack.c.l.b16 %v639
        %v704 = vunpack.c.l.b16 %v640
        %v705 = vunpack.c.l.b16 %v641
        %v706 = vunpack.c.l.b16 %v642
        %v707 = vunpack.c.l.b16 %v643
        %v708 = vunpack.c.l.b16 %v644
        %v709 = vunpack.c.l.b16 %v645
        %v710 = vunpack.c.l.b16 %v646
        %v711 = vunpack.c.l.b16 %v647
        %v712 = vunpack.c.l.b16 %v648
        %v713 = vunpack.c.l.b16 %v649
        %v714 = vunpack.c.l.b16 %v650
        %v715 = vunpack.c.l.b16 %v651
        %v716 = vunpack.c.l.b16 %v652
        %v717 = vunpack.c.l.b16 %v653
        %v718 = vunpack.c.l.b16 %v654
        %v719 = vunpack.c.l.b16 %v655
        %v720 = vunpack.c.l.b16 %v656
        %v721 = vunpack.c.l.b16 %v657
        %v722 = vunpack.c.l.b16 %v658
        %v723 = vpack.c.b16 %v692, %v691
        %v724 = vpack.c.b16 %v694, %v693
        %v725 = vpack.c.b16 %v696, %v695
        %v726 = vpack.c.b16 %v698, %v697
        %v727 = vpack.c.b16 %v700, %v699
        %v728 = vpack.c.b16 %v702, %v701
        %v729 = vpack.c.b16 %v704, %v703
        %v730 = vpack.c.b16 %v706, %v705
        %v731 = vpack.c.b16 %v708, %v707
        %v732 = vpack.c.b16 %v710, %v709
        %v733 = vpack.c.b16 %v712, %v711
        %v734 = vpack.c.b16 %v714, %v713
        %v735 = vpack.c.b16 %v716, %v715
        %v736 = vpack.c.b16 %v718, %v717
        %v737 = vpack.c.b16 %v720, %v719
        %v738 = vpack.c.b16 %v722, %v721
        %755 = vmatprep.subr.bf16.mxu0 0
        %756 = vmatpush1.bf16.msra.mxu0 %v723
        %757 = vmatprep.subr.bf16.mxu0 0
        %758 = vmatpush1.bf16.msra.mxu0 %v724
        %759 = vmatprep.subr.bf16.mxu0 0
        %760 = vmatpush1.bf16.msra.mxu0 %v725
        %761 = vmatprep.subr.bf16.mxu0 0
        %762 = vmatpush1.bf16.msra.mxu0 %v726
        %763 = vmatprep.subr.bf16.mxu0 0
        %764 = vmatpush1.bf16.msra.mxu0 %v727
        %765 = vmatprep.subr.bf16.mxu0 0
        %766 = vmatpush1.bf16.msra.mxu0 %v728
        %767 = vmatprep.subr.bf16.mxu0 0
        %768 = vmatpush1.bf16.msra.mxu0 %v729
        %769 = vmatprep.subr.bf16.mxu0 0
        %770 = vmatpush1.bf16.msra.mxu0 %v730
        %771 = vmatprep.subr.bf16.mxu0 0
        %772 = vmatpush1.bf16.msra.mxu0 %v731
        %773 = vmatprep.subr.bf16.mxu0 0
        %774 = vmatpush1.bf16.msra.mxu0 %v732
        %775 = vmatprep.subr.bf16.mxu0 0
        %776 = vmatpush1.bf16.msra.mxu0 %v733
        %777 = vmatprep.subr.bf16.mxu0 0
        %778 = vmatpush1.bf16.msra.mxu0 %v734
        %779 = vmatprep.subr.bf16.mxu0 0
        %780 = vmatpush1.bf16.msra.mxu0 %v735
        %781 = vmatprep.subr.bf16.mxu0 0
        %782 = vmatpush1.bf16.msra.mxu0 %v736
        %783 = vmatprep.subr.bf16.mxu0 0
        %784 = vmatpush1.bf16.msra.mxu0 %v737
        %785 = vmatprep.subr.bf16.mxu0 0
        %786 = vmatpush1.bf16.msra.mxu0 %v738
        %787 = vmatprep.mubr.bf16.mxu0 %v626
        %788 = vmatmul.mubr.bf16.gmra.mrb[0].mxu0 %v625
        %v789 = vpop.f32.mrb[0].mxu0
        %v790 = vadd.f32 0.0, %v789
        %v791 = vpop.f32.mrb[0].mxu0
        %v792 = vpop.f32.mrb[0].mxu0
        %v793 = vpop.f32.mrb[0].mxu0
        %794 = vdwg.mxu0
        %v795 = vadd.f32 %v624, %v790
        %796 = vst [vmem:[#allocation2] sm:$0xff] %v795
        %p797 = scmp.eq.s32.totalorder %s32, 1
        // Predicated region
        $region73: #{tpu_custom_call.1} parent=55 // pred_check
          %p798 = pneg %p797
        $region74: #{tpu_custom_call.1} parent=55 // pred_check_branch
          %800 = sbr.rel (%p798) target = $region76
        $region75: #{tpu_custom_call.1} parent=55 // pred_region
          %v801 = vld [vmem:[#allocation2] sm:$0xff]
          %v802 = vmax.f32 %v801, 0.0
          %v803 = vpack.c.bf16 %v802, %v802
          %v804 = vld [vmem:[%s4] sm:$0xf]
          %v805 = vld [vmem:[%s4 + $0x4] sm:$0xf]
          %v806 = vld [vmem:[%s4 + $0x8] sm:$0xf]
          %v807 = vld [vmem:[%s4 + $0xc] sm:$0xf]
          %v808 = vld [vmem:[%s4 + $0x10] sm:$0xf]
          %v809 = vld [vmem:[%s4 + $0x14] sm:$0xf]
          %v810 = vld [vmem:[%s4 + $0x18] sm:$0xf]
          %v811 = vld [vmem:[%s4 + $0x1c] sm:$0xf]
          %v812 = vld [vmem:[%s4 + $0x20] sm:$0xf]
          %v813 = vld [vmem:[%s4 + $0x24] sm:$0xf]
          %v814 = vld [vmem:[%s4 + $0x28] sm:$0xf]
          %v815 = vld [vmem:[%s4 + $0x2c] sm:$0xf]
          %v816 = vld [vmem:[%s4 + $0x30] sm:$0xf]
          %v817 = vld [vmem:[%s4 + $0x34] sm:$0xf]
          %v818 = vld [vmem:[%s4 + $0x38] sm:$0xf]
          %v819 = vld [vmem:[%s4 + $0x3c] sm:$0xf]
          %v820 = vld [vmem:[%s5] sm:$0x1]
          %v822 = vlaneseq
          %v823 = vshrl.u32 %v822, 7
          %v824 = vsub.s32 0, %v823
          %v825 = vrot.slane %v820, %v824
          %v843 = vunpack.c.l.b16 %v804
          %v844 = vunpack.c.l.b16 %v805
          %v845 = vunpack.c.l.b16 %v806
          %v846 = vunpack.c.l.b16 %v807
          %v847 = vunpack.c.l.b16 %v808
          %v848 = vunpack.c.l.b16 %v809
          %v849 = vunpack.c.l.b16 %v810
          %v850 = vunpack.c.l.b16 %v811
          %v851 = vunpack.c.l.b16 %v812
          %v852 = vunpack.c.l.b16 %v813
          %v853 = vunpack.c.l.b16 %v814
          %v854 = vunpack.c.l.b16 %v815
          %v855 = vunpack.c.l.b16 %v816
          %v856 = vunpack.c.l.b16 %v817
          %v857 = vunpack.c.l.b16 %v818
          %v858 = vunpack.c.l.b16 %v819
          %v859 = vpack.c.b16 %v844, %v843
          %v860 = vpack.c.b16 %v846, %v845
          %v861 = vpack.c.b16 %v848, %v847
          %v862 = vpack.c.b16 %v850, %v849
          %v863 = vpack.c.b16 %v852, %v851
          %v864 = vpack.c.b16 %v854, %v853
          %v865 = vpack.c.b16 %v856, %v855
          %v866 = vpack.c.b16 %v858, %v857
          %875 = vmatprep.subr.bf16.mxu0 0
          %876 = vmatpush1.bf16.msra.mxu0 %v859
          %877 = vmatprep.subr.bf16.mxu0 0
          %878 = vmatpush1.bf16.msra.mxu0 %v860
          %879 = vmatprep.subr.bf16.mxu0 0
          %880 = vmatpush1.bf16.msra.mxu0 %v861
          %881 = vmatprep.subr.bf16.mxu0 0
          %882 = vmatpush1.bf16.msra.mxu0 %v862
          %883 = vmatprep.subr.bf16.mxu0 0
          %884 = vmatpush1.bf16.msra.mxu0 %v863
          %885 = vmatprep.subr.bf16.mxu0 0
          %886 = vmatpush1.bf16.msra.mxu0 %v864
          %887 = vmatprep.subr.bf16.mxu0 0
          %888 = vmatpush1.bf16.msra.mxu0 %v865
          %889 = vmatprep.subr.bf16.mxu0 0
          %890 = vmatpush1.bf16.msra.mxu0 %v866
          %891 = vmatprep.subr.bf16.mxu0 0
          %892 = vmatpush1.bf16.msra.mxu0 0
          %893 = vmatprep.subr.bf16.mxu0 0
          %894 = vmatpush1.bf16.msra.mxu0 0
          %895 = vmatprep.subr.bf16.mxu0 0
          %896 = vmatpush1.bf16.msra.mxu0 0
          %897 = vmatprep.subr.bf16.mxu0 0
          %898 = vmatpush1.bf16.msra.mxu0 0
          %899 = vmatprep.subr.bf16.mxu0 0
          %900 = vmatpush1.bf16.msra.mxu0 0
          %901 = vmatprep.subr.bf16.mxu0 0
          %902 = vmatpush1.bf16.msra.mxu0 0
          %903 = vmatprep.subr.bf16.mxu0 0
          %904 = vmatpush1.bf16.msra.mxu0 0
          %905 = vmatprep.subr.bf16.mxu0 0
          %906 = vmatpush1.bf16.msra.mxu0 0
          %907 = vmatprep.mubr.bf16.mxu0 0
          %908 = vmatmul.mubr.bf16.gmra.mrb[0].mxu0 %v803
          %v909 = vpop.f32.mrb[0].mxu0
          %v910 = vadd.f32 %v825, %v909
          %v911 = vpop.f32.mrb[0].mxu0
          %v912 = vpop.f32.mrb[0].mxu0
          %v913 = vpop.f32.mrb[0].mxu0
          %914 = vdwg.mxu0
          %v915 = vmax.f32 %v910, 0.0
          %v916 = vpack.c.bf16 %v915, %v915
          %v917 = vld [vmem:[%s6] sm:$0xf]
          %v918 = vld [vmem:[%s6 + $0x4] sm:$0xf]
          %v919 = vld [vmem:[%s6 + $0x8] sm:$0xf]
          %v920 = vld [vmem:[%s6 + $0xc] sm:$0xf]
          %v921 = vld [vmem:[%s6 + $0x10] sm:$0xf]
          %v922 = vld [vmem:[%s6 + $0x14] sm:$0xf]
          %v923 = vld [vmem:[%s6 + $0x18] sm:$0xf]
          %v924 = vld [vmem:[%s6 + $0x1c] sm:$0xf]
          %v925 = vld [vmem:[%s6 + $0x20] sm:$0xf]
          %v926 = vld [vmem:[%s6 + $0x24] sm:$0xf]
          %v927 = vld [vmem:[%s6 + $0x28] sm:$0xf]
          %v928 = vld [vmem:[%s6 + $0x2c] sm:$0xf]
          %v929 = vld [vmem:[%s6 + $0x30] sm:$0xf]
          %v930 = vld [vmem:[%s6 + $0x34] sm:$0xf]
          %v931 = vld [vmem:[%s6 + $0x38] sm:$0xf]
          %v932 = vld [vmem:[%s6 + $0x3c] sm:$0xf]
          %v933 = vld [vmem:[%s7] sm:$0x1]
          %v935 = vlaneseq
          %v936 = vshrl.u32 %v935, 7
          %v937 = vsub.s32 0, %v936
          %v938 = vrot.slane %v933, %v937
          %v956 = vunpack.c.l.b16 %v917
          %v957 = vunpack.c.l.b16 %v918
          %v958 = vunpack.c.l.b16 %v919
          %v959 = vunpack.c.l.b16 %v920
          %v960 = vunpack.c.l.b16 %v921
          %v961 = vunpack.c.l.b16 %v922
          %v962 = vunpack.c.l.b16 %v923
          %v963 = vunpack.c.l.b16 %v924
          %v964 = vunpack.c.l.b16 %v925
          %v965 = vunpack.c.l.b16 %v926
          %v966 = vunpack.c.l.b16 %v927
          %v967 = vunpack.c.l.b16 %v928
          %v968 = vunpack.c.l.b16 %v929
          %v969 = vunpack.c.l.b16 %v930
          %v970 = vunpack.c.l.b16 %v931
          %v971 = vunpack.c.l.b16 %v932
          %v972 = vpack.c.b16 %v957, %v956
          %v973 = vpack.c.b16 %v959, %v958
          %v974 = vpack.c.b16 %v961, %v960
          %v975 = vpack.c.b16 %v963, %v962
          %v976 = vpack.c.b16 %v965, %v964
          %v977 = vpack.c.b16 %v967, %v966
          %v978 = vpack.c.b16 %v969, %v968
          %v979 = vpack.c.b16 %v971, %v970
          %988 = vmatprep.subr.bf16.mxu0 0
          %989 = vmatpush1.bf16.msra.mxu0 %v972
          %990 = vmatprep.subr.bf16.mxu0 0
          %991 = vmatpush1.bf16.msra.mxu0 %v973
          %992 = vmatprep.subr.bf16.mxu0 0
          %993 = vmatpush1.bf16.msra.mxu0 %v974
          %994 = vmatprep.subr.bf16.mxu0 0
          %995 = vmatpush1.bf16.msra.mxu0 %v975
          %996 = vmatprep.subr.bf16.mxu0 0
          %997 = vmatpush1.bf16.msra.mxu0 %v976
          %998 = vmatprep.subr.bf16.mxu0 0
          %999 = vmatpush1.bf16.msra.mxu0 %v977
          %1000 = vmatprep.subr.bf16.mxu0 0
          %1001 = vmatpush1.bf16.msra.mxu0 %v978
          %1002 = vmatprep.subr.bf16.mxu0 0
          %1003 = vmatpush1.bf16.msra.mxu0 %v979
          %1004 = vmatprep.subr.bf16.mxu0 0
          %1005 = vmatpush1.bf16.msra.mxu0 0
          %1006 = vmatprep.subr.bf16.mxu0 0
          %1007 = vmatpush1.bf16.msra.mxu0 0
          %1008 = vmatprep.subr.bf16.mxu0 0
          %1009 = vmatpush1.bf16.msra.mxu0 0
          %1010 = vmatprep.subr.bf16.mxu0 0
          %1011 = vmatpush1.bf16.msra.mxu0 0
          %1012 = vmatprep.subr.bf16.mxu0 0
          %1013 = vmatpush1.bf16.msra.mxu0 0
          %1014 = vmatprep.subr.bf16.mxu0 0
          %1015 = vmatpush1.bf16.msra.mxu0 0
          %1016 = vmatprep.subr.bf16.mxu0 0
          %1017 = vmatpush1.bf16.msra.mxu0 0
          %1018 = vmatprep.subr.bf16.mxu0 0
          %1019 = vmatpush1.bf16.msra.mxu0 0
          %1020 = vmatprep.mubr.bf16.mxu0 0
          %1021 = vmatmul.mubr.bf16.gmra.mrb[0].mxu0 %v916
          %v1022 = vpop.f32.mrb[0].mxu0
          %v1023 = vadd.f32 %v938, %v1022
          %v1024 = vpop.f32.mrb[0].mxu0
          %v1025 = vpop.f32.mrb[0].mxu0
          %v1026 = vpop.f32.mrb[0].mxu0
          %1027 = vdwg.mxu0
          %v1028 = vmax.f32 %v1023, 0.0
          %v1029 = vpack.c.bf16 %v1028, %v1028
          %v1030 = vld [vmem:[#allocation10] sm:$0xf]
          %v1031 = vld [vmem:[#allocation10 + $0x4] sm:$0xf]
          %v1032 = vld [vmem:[#allocation10 + $0x8] sm:$0xf]
          %v1033 = vld [vmem:[#allocation10 + $0xc] sm:$0xf]
          %v1034 = vld [vmem:[#allocation10 + $0x10] sm:$0xf]
          %v1035 = vld [vmem:[#allocation10 + $0x14] sm:$0xf]
          %v1036 = vld [vmem:[#allocation10 + $0x18] sm:$0xf]
          %v1037 = vld [vmem:[#allocation10 + $0x1c] sm:$0xf]
          %v1038 = vld [vmem:[#allocation10 + $0x20] sm:$0xf]
          %v1039 = vld [vmem:[#allocation10 + $0x24] sm:$0xf]
          %v1040 = vld [vmem:[#allocation10 + $0x28] sm:$0xf]
          %v1041 = vld [vmem:[#allocation10 + $0x2c] sm:$0xf]
          %v1042 = vld [vmem:[#allocation10 + $0x30] sm:$0xf]
          %v1043 = vld [vmem:[#allocation10 + $0x34] sm:$0xf]
          %v1044 = vld [vmem:[#allocation10 + $0x38] sm:$0xf]
          %v1045 = vld [vmem:[#allocation10 + $0x3c] sm:$0xf]
          %v1046 = vld [vmem:[%s9] sm:$0x1]
          %v1048 = vlaneseq
          %v1049 = vshrl.u32 %v1048, 7
          %v1050 = vsub.s32 0, %v1049
          %v1051 = vrot.slane %v1046, %v1050
          %v1069 = vunpack.c.l.b16 %v1030
          %v1070 = vunpack.c.l.b16 %v1031
          %v1071 = vunpack.c.l.b16 %v1032
          %v1072 = vunpack.c.l.b16 %v1033
          %v1073 = vunpack.c.l.b16 %v1034
          %v1074 = vunpack.c.l.b16 %v1035
          %v1075 = vunpack.c.l.b16 %v1036
          %v1076 = vunpack.c.l.b16 %v1037
          %v1077 = vunpack.c.l.b16 %v1038
          %v1078 = vunpack.c.l.b16 %v1039
          %v1079 = vunpack.c.l.b16 %v1040
          %v1080 = vunpack.c.l.b16 %v1041
          %v1081 = vunpack.c.l.b16 %v1042
          %v1082 = vunpack.c.l.b16 %v1043
          %v1083 = vunpack.c.l.b16 %v1044
          %v1084 = vunpack.c.l.b16 %v1045
          %v1085 = vpack.c.b16 %v1070, %v1069
          %v1086 = vpack.c.b16 %v1072, %v1071
          %v1087 = vpack.c.b16 %v1074, %v1073
          %v1088 = vpack.c.b16 %v1076, %v1075
          %v1089 = vpack.c.b16 %v1078, %v1077
          %v1090 = vpack.c.b16 %v1080, %v1079
          %v1091 = vpack.c.b16 %v1082, %v1081
          %v1092 = vpack.c.b16 %v1084, %v1083
          %1101 = vmatprep.subr.bf16.mxu0 0
          %1102 = vmatpush1.bf16.msra.mxu0 %v1085
          %1103 = vmatprep.subr.bf16.mxu0 0
          %1104 = vmatpush1.bf16.msra.mxu0 %v1086
          %1105 = vmatprep.subr.bf16.mxu0 0
          %1106 = vmatpush1.bf16.msra.mxu0 %v1087
          %1107 = vmatprep.subr.bf16.mxu0 0
          %1108 = vmatpush1.bf16.msra.mxu0 %v1088
          %1109 = vmatprep.subr.bf16.mxu0 0
          %1110 = vmatpush1.bf16.msra.mxu0 %v1089
          %1111 = vmatprep.subr.bf16.mxu0 0
          %1112 = vmatpush1.bf16.msra.mxu0 %v1090
          %1113 = vmatprep.subr.bf16.mxu0 0
          %1114 = vmatpush1.bf16.msra.mxu0 %v1091
          %1115 = vmatprep.subr.bf16.mxu0 0
          %1116 = vmatpush1.bf16.msra.mxu0 %v1092
          %1117 = vmatprep.subr.bf16.mxu0 0
          %1118 = vmatpush1.bf16.msra.mxu0 0
          %1119 = vmatprep.subr.bf16.mxu0 0
          %1120 = vmatpush1.bf16.msra.mxu0 0
          %1121 = vmatprep.subr.bf16.mxu0 0
          %1122 = vmatpush1.bf16.msra.mxu0 0
          %1123 = vmatprep.subr.bf16.mxu0 0
          %1124 = vmatpush1.bf16.msra.mxu0 0
          %1125 = vmatprep.subr.bf16.mxu0 0
          %1126 = vmatpush1.bf16.msra.mxu0 0
          %1127 = vmatprep.subr.bf16.mxu0 0
          %1128 = vmatpush1.bf16.msra.mxu0 0
          %1129 = vmatprep.subr.bf16.mxu0 0
          %1130 = vmatpush1.bf16.msra.mxu0 0
          %1131 = vmatprep.subr.bf16.mxu0 0
          %1132 = vmatpush1.bf16.msra.mxu0 0
          %1133 = vmatprep.mubr.bf16.mxu0 0
          %1134 = vmatmul.mubr.bf16.gmra.mrb[0].mxu0 %v1029
          %v1135 = vpop.f32.mrb[0].mxu0
          %v1136 = vadd.f32 %v1051, %v1135
          %v1137 = vpop.f32.mrb[0].mxu0
          %v1138 = vpop.f32.mrb[0].mxu0
          %v1139 = vpop.f32.mrb[0].mxu0
          %1140 = vdwg.mxu0
          %1141 = vst [vmem:[#allocation11] sm:$0xff] %v1136
        $region76: #{tpu_custom_call.1} parent=55 // pred_fallthru
          _
        // Predicated region
        $region77: #{tpu_custom_call.1} parent=55 // pred_check
          %p1142 = pneg %p241
        $region78: #{tpu_custom_call.1} parent=55 // pred_check_branch
          %1144 = sbr.rel (%p1142) target = $region80
        $region79: #{tpu_custom_call.1} parent=55 // pred_region
          %s1146 = ssub.s32 128, 128
          %1147 = vsyncadd [#allocation7], %s1146
          %s1149 = sshll.u32 [#allocation11], 4
          %s1150 = int_to_ptr.vmem [resolvable:$true] %s1149
          %1152 = dma.vmem_to_hbm [thread:$0]  %s1150, 128, %s10, [#allocation7]
        $region80: #{tpu_custom_call.1} parent=55 // pred_fallthru
          _
        // Predicated region
        $region81: #{tpu_custom_call.1} parent=55 // pred_check
          %p1153 = pneg %p241
        $region82: #{tpu_custom_call.1} parent=55 // pred_check_branch
          %1155 = sbr.rel (%p1153) target = $region84
        $region83: #{tpu_custom_call.1} parent=55 // pred_region
          %1156 = dma.done [#allocation7], 128
        $region84: #{tpu_custom_call.1} parent=55 // pred_fallthru
          _
      $region56: #{tpu_custom_call.1} parent=5 // pred_fallthru
        _
      %p1157 = scmp.le.s32.totalorder 2, %s27
      // Predicated region
      $region85: #{tpu_custom_call.1} parent=5 // pred_check
        %p1158 = pneg %p1157
      $region86: #{tpu_custom_call.1} parent=5 // pred_check_branch
        %1160 = sbr.rel (%p1158) target = $region88
      $region87: #{tpu_custom_call.1} parent=5 // pred_region
        %s1161 = ssub.s32 %s27, 2
      $region88: #{tpu_custom_call.1} parent=5 // pred_fallthru
        _
    $region6: #{tpu_custom_call.1} parent=1 // loop_footer
      %s31 = sadd.s32 1, %s27
    $region7: #{tpu_custom_call.1} parent=1 // loop_footer_branch
      %26 = sbr.rel target = $region3
    $region8: #{tpu_custom_call.1} parent=1 // loop_exit
      _
    %1162 = vsyncpa [#allocation6], 1
    %s1163 = scalar_lea.sflag [#allocation6], 1
    %1164 = vsyncpa %s1163, 1
    %1165 = vsyncpa [#allocation9], 1
    %s1166 = scalar_lea.sflag [#allocation9], 1
    %1167 = vsyncpa %s1166, 1
    %1168 = vsyncpa [#allocation7], 1
    %s1169 = scalar_lea.sflag [#allocation7], 1
    %1170 = vsyncpa %s1169, 1

</llo_original>
